<compile_context>
chip_gen: v6e
topology: v6e:2x2x1
jax: 0.10.0
libtpu: 0.0.40
codegen_flags: <defaults>
</compile_context>

<pallas_src>
import functools

import jax
import jax.numpy as jnp
from jax.experimental import pallas as pl
from jax.experimental.pallas import tpu as pltpu

_LANE = 128
_NEG_SLOPE = 0.2


def _round_up(n, m):
    return ((n + m - 1) // m) * m


def generator_kernel(x_ref,
                     w1_ref, b1_ref,
                     w2_ref, b2_ref,
                     w3_ref, b3_ref,
                     w4_ref, b4_ref,
                     out_ref):
    # One batch tile per grid step; weights/biases are VMEM-resident
    # (constant-block, single-buffered). Matmuls run in bf16 on the MXU with
    # f32 accumulation; bias add / leaky_relu / tanh stay in f32 on the VPU/EUP.
    def layer(h_bf16, w_ref, b_ref):
        acc = jnp.dot(h_bf16, w_ref[...], preferred_element_type=jnp.float32)
        acc = acc + b_ref[...]
        # leaky_relu(a, 0.2) == max(a, 0.2*a): one VPU max instead of cmp+sel.
        return jnp.maximum(acc, _NEG_SLOPE * acc)

    h = x_ref[...]                                     # bf16 [TILE_B, d0p]
    h = layer(h, w1_ref, b1_ref)                       # f32  [TILE_B, d1p]
    # dropout(0.3) -> identity (eval mode)
    h = layer(h.astype(jnp.bfloat16), w2_ref, b2_ref)  # f32  [TILE_B, d2p]
    # dropout(0.3) -> identity (eval mode)
    h = layer(h.astype(jnp.bfloat16), w3_ref, b3_ref)  # f32  [TILE_B, d3p]
    # dropout(0.3) -> identity (eval mode)
    acc = jnp.dot(h.astype(jnp.bfloat16), w4_ref[...],
                  preferred_element_type=jnp.float32) + b4_ref[...]
    out_ref[...] = jnp.tanh(acc).astype(out_ref.dtype)


def prepare_generator_params(params):
    """One-time pad + quantize of the generator weights.

    Pads every feature dim up to a multiple of 128 (lane-dense, unmasked vst)
    and casts weights to bf16 (MXU operands). Zero padding is semantics
    preserving: padded bias columns are 0, so padded activations stay exactly 0
    through leaky_relu and the zero weight rows/cols; padded output columns are
    sliced away in the wrapper. Hoisted out of the forward path so each forward
    call touches the weights exactly once (inside the fused kernel).
    """
    dims = [params["w1"].shape[0]] + [params[f"w{i}"].shape[1] for i in (1, 2, 3, 4)]
    padded = [_round_up(d, _LANE) for d in dims]

    prepared = {}
    for i in (1, 2, 3, 4):
        w, b = params[f"w{i}"], params[f"b{i}"]
        rows, cols = padded[i - 1], padded[i]
        prepared[f"w{i}"] = jnp.pad(
            w, ((0, rows - w.shape[0]), (0, cols - w.shape[1]))).astype(jnp.bfloat16)
        prepared[f"b{i}"] = jnp.pad(
            b, ((0, 0), (0, cols - b.shape[1]))).astype(jnp.float32)
    return prepared, tuple(dims)


def _default_tile_b(batch):
    bp = _round_up(batch, _LANE)
    if bp <= _LANE:
        return _LANE
    # Keep >= 2 grid steps (x/out double-buffer pipelining; 2 TCs on v7x via
    # the "parallel" batch axis), cap the tile at 512 rows.
    return max(_LANE, min(512, _round_up(bp // 2, _LANE)))


@functools.partial(jax.jit, static_argnames=("out_features", "tile_b"))
def generator_forward(x, prepared, out_features, tile_b=None):
    """x: [B, input_size] f32; prepared: dict from prepare_generator_params."""
    w1, b1 = prepared["w1"], prepared["b1"]
    w2, b2 = prepared["w2"], prepared["b2"]
    w3, b3 = prepared["w3"], prepared["b3"]
    w4, b4 = prepared["w4"], prepared["b4"]

    B, d0 = x.shape
    d0p, d1p = w1.shape
    d2p = w2.shape[1]
    d3p = w3.shape[1]
    d4p = w4.shape[1]

    if tile_b is None:
        tile_b = _default_tile_b(B)
    bp = _round_up(B, tile_b)

    # Pad x to [bp, d0p]: tile-aligned batch + lane-dense feature dim (the
    # padded columns hit zero rows of w1; padded rows are sliced away below).
    if (bp, d0p) != (B, d0):
        x = jnp.pad(x, ((0, bp - B), (0, d0p - d0)))
    x = x.astype(jnp.bfloat16)

    grid = (bp // tile_b,)

    def resident(shape):
        # Constant index_map -> block fetched once and kept VMEM-resident.
        # Single-buffer it: double-buffering a never-revisited block only
        # burns VMEM.
        return pl.BlockSpec(shape, lambda i: (0, 0),
                            pipeline_mode=pl.Buffered(buffer_count=1))

    # Explicit VMEM budget: single-buffered weights + double-buffered x/out
    # tiles + f32/bf16 activation scratch, with 2x headroom. Floor at 32 MiB
    # (>= default scoped limit everywhere), cap at 64 MiB (legal incl. v7x).
    weight_bytes = sum(int(a.size) * a.dtype.itemsize
                       for a in (w1, b1, w2, b2, w3, b3, w4, b4))
    io_bytes = 2 * tile_b * (d0p * 2 + d4p * 4)
    act_bytes = tile_b * (d1p + d2p + d3p + d4p) * (4 + 2)
    est = 2 * (weight_bytes + io_bytes + act_bytes) + (8 << 20)
    vmem_limit = int(min(64 << 20, max(32 << 20, est)))

    flops = 2 * bp * (d0p * d1p + d1p * d2p + d2p * d3p + d3p * d4p)
    bytes_accessed = bp * d0p * 2 + bp * d4p * 4 + weight_bytes
    cost = pl.CostEstimate(flops=flops,
                           transcendentals=bp * d4p,
                           bytes_accessed=bytes_accessed)

    out_p = pl.pallas_call(
        generator_kernel,
        out_shape=jax.ShapeDtypeStruct((bp, d4p), jnp.float32),
        grid=grid,
        in_specs=[
            pl.BlockSpec((tile_b, d0p), lambda i: (i, 0)),   # x: batch-tiled
            resident((d0p, d1p)), resident((1, d1p)),
            resident((d1p, d2p)), resident((1, d2p)),
            resident((d2p, d3p)), resident((1, d3p)),
            resident((d3p, d4p)), resident((1, d4p)),
        ],
        out_specs=pl.BlockSpec((tile_b, d4p), lambda i: (i, 0)),
        compiler_params=pltpu.CompilerParams(
            dimension_semantics=(pltpu.PARALLEL,),
            vmem_limit_bytes=vmem_limit),
        cost_estimate=cost,
    )(x, w1, b1, w2, b2, w3, b3, w4, b4)

    if (bp, d4p) == (B, out_features):
        return out_p
    return out_p[:B, :out_features]


def init_generator_params(key, input_size, hidden_dim, output_size):
    """Deterministic init mimicking PyTorch Linear default U(-1/sqrt(fan_in), ...)."""
    dims = [(input_size, hidden_dim),
            (hidden_dim, hidden_dim * 2),
            (hidden_dim * 2, hidden_dim * 4),
            (hidden_dim * 4, output_size)]
    params = {}
    keys = jax.random.split(key, 2 * len(dims))
    for i, (fan_in, fan_out) in enumerate(dims):
        bound = 1.0 / jnp.sqrt(jnp.float32(fan_in))
        w = jax.random.uniform(keys[2 * i], (fan_in, fan_out),
                               minval=-bound, maxval=bound, dtype=jnp.float32)
        b = jax.random.uniform(keys[2 * i + 1], (1, fan_out),
                               minval=-bound, maxval=bound, dtype=jnp.float32)
        params[f"w{i + 1}"] = w
        params[f"b{i + 1}"] = b
    return params


def reference_forward(x, params):
    h = x
    for i in (1, 2, 3):
        h = h @ params[f"w{i}"] + params[f"b{i}"]
        h = jnp.where(h > 0, h, 0.2 * h)
    h = h @ params["w4"] + params["b4"]
    return jnp.tanh(h)


if __name__ == "__main__":
    # Small, module-consistent shapes: latent 48, hidden 32 (-> 32/64/128), out 64.
    # batch=256 -> auto tile_b=128 -> 2 grid steps, exercising the batch pipeline.
    batch = 256
    input_size = 48
    hidden_dim = 32
    output_size = 64

    key = jax.random.PRNGKey(0)
    k_params, k_x = jax.random.split(key)
    params = init_generator_params(k_params, input_size, hidden_dim, output_size)
    x = jax.random.normal(k_x, (batch, input_size), dtype=jnp.float32)

    # One-time weight pad/quantize, hoisted out of the forward path.
    prepared, _dims = prepare_generator_params(params)

    out = generator_forward(x, prepared, out_features=output_size)
    out = jax.block_until_ready(out)

    ref = reference_forward(x, params)
    assert out.shape == (batch, output_size), out.shape
    # Tolerance loosened vs. the pure-f32 reference because matmul operands are
    # quantized to bf16 on the MXU (f32 accumulation keeps it tight).
    max_err = float(jnp.max(jnp.abs(out - ref)))
    assert max_err < 5e-2, f"mismatch vs. JAX reference (max abs err {max_err})"

    print("KERNEL_OK")
</pallas_src>

<mosaic_0001>
module attributes {stable_mosaic.version = 11 : i64} {
  func.func @generator_kernel(%arg0: i32, %arg1: memref<128x128xbf16, #tpu.memory_space<vmem>>, %arg2: memref<128x128xbf16, #tpu.memory_space<vmem>>, %arg3: memref<1x128xf32, #tpu.memory_space<vmem>>, %arg4: memref<128x128xbf16, #tpu.memory_space<vmem>>, %arg5: memref<1x128xf32, #tpu.memory_space<vmem>>, %arg6: memref<128x128xbf16, #tpu.memory_space<vmem>>, %arg7: memref<1x128xf32, #tpu.memory_space<vmem>>, %arg8: memref<128x128xbf16, #tpu.memory_space<vmem>>, %arg9: memref<1x128xf32, #tpu.memory_space<vmem>>, %arg10: memref<128x128xf32, #tpu.memory_space<vmem>>) attributes {dimension_semantics = [#tpu.dimension_semantics<parallel>], iteration_bounds = array<i64: 2>, scalar_prefetch = 0 : i64, scratch_operands = 0 : i64, tpu.core_type = #tpu.core_type<tc>, window_params = [{transform_indices = @transform_0, window_bounds = array<i64: 128, 128>}, {pipeline_mode = #tpu.pipeline_mode<synchronous>, transform_indices = @transform_1, window_bounds = array<i64: 128, 128>}, {pipeline_mode = #tpu.pipeline_mode<synchronous>, transform_indices = @transform_2, window_bounds = array<i64: 1, 128>}, {pipeline_mode = #tpu.pipeline_mode<synchronous>, transform_indices = @transform_3, window_bounds = array<i64: 128, 128>}, {pipeline_mode = #tpu.pipeline_mode<synchronous>, transform_indices = @transform_4, window_bounds = array<i64: 1, 128>}, {pipeline_mode = #tpu.pipeline_mode<synchronous>, transform_indices = @transform_5, window_bounds = array<i64: 128, 128>}, {pipeline_mode = #tpu.pipeline_mode<synchronous>, transform_indices = @transform_6, window_bounds = array<i64: 1, 128>}, {pipeline_mode = #tpu.pipeline_mode<synchronous>, transform_indices = @transform_7, window_bounds = array<i64: 128, 128>}, {pipeline_mode = #tpu.pipeline_mode<synchronous>, transform_indices = @transform_8, window_bounds = array<i64: 1, 128>}, {transform_indices = @transform_9, window_bounds = array<i64: 128, 128>}]} {
    %c0 = arith.constant 0 : index
    %c0_0 = arith.constant 0 : index
    %0 = vector.load %arg1[%c0, %c0_0] : memref<128x128xbf16, #tpu.memory_space<vmem>>, vector<128x128xbf16>
    %c0_1 = arith.constant 0 : index
    %c0_2 = arith.constant 0 : index
    %1 = vector.load %arg2[%c0_1, %c0_2] : memref<128x128xbf16, #tpu.memory_space<vmem>>, vector<128x128xbf16>
    %cst = arith.constant dense<0.000000e+00> : vector<128x128xf32>
    %2 = tpu.matmul %0, %1, %cst {dimension_numbers = #tpu.dot_dimension_numbers<[1], [0], [0], [1], [0, 0, 1, 1], [], []>} : vector<128x128xbf16>, vector<128x128xbf16>, vector<128x128xf32> -> vector<128x128xf32>
    %c0_3 = arith.constant 0 : index
    %c0_4 = arith.constant 0 : index
    %3 = vector.load %arg3[%c0_3, %c0_4] : memref<1x128xf32, #tpu.memory_space<vmem>>, vector<1x128xf32>
    %4 = vector.broadcast %3 : vector<1x128xf32> to vector<128x128xf32>
    %5 = arith.addf %2, %4 : vector<128x128xf32>
    %cst_5 = arith.constant 2.000000e-01 : f32
    %6 = vector.broadcast %cst_5 : f32 to vector<128x128xf32>
    %7 = arith.mulf %6, %5 : vector<128x128xf32>
    %8 = arith.maximumf %5, %7 : vector<128x128xf32>
    %9 = arith.truncf %8 : vector<128x128xf32> to vector<128x128xbf16>
    %c0_6 = arith.constant 0 : index
    %c0_7 = arith.constant 0 : index
    %10 = vector.load %arg4[%c0_6, %c0_7] : memref<128x128xbf16, #tpu.memory_space<vmem>>, vector<128x128xbf16>
    %cst_8 = arith.constant dense<0.000000e+00> : vector<128x128xf32>
    %11 = tpu.matmul %9, %10, %cst_8 {dimension_numbers = #tpu.dot_dimension_numbers<[1], [0], [0], [1], [0, 0, 1, 1], [], []>} : vector<128x128xbf16>, vector<128x128xbf16>, vector<128x128xf32> -> vector<128x128xf32>
    %c0_9 = arith.constant 0 : index
    %c0_10 = arith.constant 0 : index
    %12 = vector.load %arg5[%c0_9, %c0_10] : memref<1x128xf32, #tpu.memory_space<vmem>>, vector<1x128xf32>
    %13 = vector.broadcast %12 : vector<1x128xf32> to vector<128x128xf32>
    %14 = arith.addf %11, %13 : vector<128x128xf32>
    %cst_11 = arith.constant 2.000000e-01 : f32
    %15 = vector.broadcast %cst_11 : f32 to vector<128x128xf32>
    %16 = arith.mulf %15, %14 : vector<128x128xf32>
    %17 = arith.maximumf %14, %16 : vector<128x128xf32>
    %18 = arith.truncf %17 : vector<128x128xf32> to vector<128x128xbf16>
    %c0_12 = arith.constant 0 : index
    %c0_13 = arith.constant 0 : index
    %19 = vector.load %arg6[%c0_12, %c0_13] : memref<128x128xbf16, #tpu.memory_space<vmem>>, vector<128x128xbf16>
    %cst_14 = arith.constant dense<0.000000e+00> : vector<128x128xf32>
    %20 = tpu.matmul %18, %19, %cst_14 {dimension_numbers = #tpu.dot_dimension_numbers<[1], [0], [0], [1], [0, 0, 1, 1], [], []>} : vector<128x128xbf16>, vector<128x128xbf16>, vector<128x128xf32> -> vector<128x128xf32>
    %c0_15 = arith.constant 0 : index
    %c0_16 = arith.constant 0 : index
    %21 = vector.load %arg7[%c0_15, %c0_16] : memref<1x128xf32, #tpu.memory_space<vmem>>, vector<1x128xf32>
    %22 = vector.broadcast %21 : vector<1x128xf32> to vector<128x128xf32>
    %23 = arith.addf %20, %22 : vector<128x128xf32>
    %cst_17 = arith.constant 2.000000e-01 : f32
    %24 = vector.broadcast %cst_17 : f32 to vector<128x128xf32>
    %25 = arith.mulf %24, %23 : vector<128x128xf32>
    %26 = arith.maximumf %23, %25 : vector<128x128xf32>
    %27 = arith.truncf %26 : vector<128x128xf32> to vector<128x128xbf16>
    %c0_18 = arith.constant 0 : index
    %c0_19 = arith.constant 0 : index
    %28 = vector.load %arg8[%c0_18, %c0_19] : memref<128x128xbf16, #tpu.memory_space<vmem>>, vector<128x128xbf16>
    %cst_20 = arith.constant dense<0.000000e+00> : vector<128x128xf32>
    %29 = tpu.matmul %27, %28, %cst_20 {dimension_numbers = #tpu.dot_dimension_numbers<[1], [0], [0], [1], [0, 0, 1, 1], [], []>} : vector<128x128xbf16>, vector<128x128xbf16>, vector<128x128xf32> -> vector<128x128xf32>
    %c0_21 = arith.constant 0 : index
    %c0_22 = arith.constant 0 : index
    %30 = vector.load %arg9[%c0_21, %c0_22] : memref<1x128xf32, #tpu.memory_space<vmem>>, vector<1x128xf32>
    %31 = vector.broadcast %30 : vector<1x128xf32> to vector<128x128xf32>
    %32 = arith.addf %29, %31 : vector<128x128xf32>
    %33 = math.tanh %32 : vector<128x128xf32>
    %c0_23 = arith.constant 0 : index
    %c0_24 = arith.constant 0 : index
    %34 = vector.load %arg10[%c0_23, %c0_24] : memref<128x128xf32, #tpu.memory_space<vmem>>, vector<128x128xf32>
    tpu.vector_store %arg10[%c0_23, %c0_24], %33 {strides = array<i32>} : memref<128x128xf32, #tpu.memory_space<vmem>>, vector<128x128xf32>,
    return
  }
  func.func @transform_0(%arg0: i32) -> (i32, i32) {
    %c0_i32 = arith.constant 0 : i32
    %c0_i32_0 = arith.constant 0 : i32
    return %arg0, %c0_i32 : i32, i32
  }
  func.func @transform_1(%arg0: i32) -> (i32, i32) {
    %c0_i32 = arith.constant 0 : i32
    %c0_i32_0 = arith.constant 0 : i32
    %c0_i32_1 = arith.constant 0 : i32
    return %c0_i32, %c0_i32_0 : i32, i32
  }
  func.func @transform_2(%arg0: i32) -> (i32, i32) {
    %c0_i32 = arith.constant 0 : i32
    %c0_i32_0 = arith.constant 0 : i32
    %c0_i32_1 = arith.constant 0 : i32
    return %c0_i32, %c0_i32_0 : i32, i32
  }
  func.func @transform_3(%arg0: i32) -> (i32, i32) {
    %c0_i32 = arith.constant 0 : i32
    %c0_i32_0 = arith.constant 0 : i32
    %c0_i32_1 = arith.constant 0 : i32
    return %c0_i32, %c0_i32_0 : i32, i32
  }
  func.func @transform_4(%arg0: i32) -> (i32, i32) {
    %c0_i32 = arith.constant 0 : i32
    %c0_i32_0 = arith.constant 0 : i32
    %c0_i32_1 = arith.constant 0 : i32
    return %c0_i32, %c0_i32_0 : i32, i32
  }
  func.func @transform_5(%arg0: i32) -> (i32, i32) {
    %c0_i32 = arith.constant 0 : i32
    %c0_i32_0 = arith.constant 0 : i32
    %c0_i32_1 = arith.constant 0 : i32
    return %c0_i32, %c0_i32_0 : i32, i32
  }
  func.func @transform_6(%arg0: i32) -> (i32, i32) {
    %c0_i32 = arith.constant 0 : i32
    %c0_i32_0 = arith.constant 0 : i32
    %c0_i32_1 = arith.constant 0 : i32
    return %c0_i32, %c0_i32_0 : i32, i32
  }
  func.func @transform_7(%arg0: i32) -> (i32, i32) {
    %c0_i32 = arith.constant 0 : i32
    %c0_i32_0 = arith.constant 0 : i32
    %c0_i32_1 = arith.constant 0 : i32
    return %c0_i32, %c0_i32_0 : i32, i32
  }
  func.func @transform_8(%arg0: i32) -> (i32, i32) {
    %c0_i32 = arith.constant 0 : i32
    %c0_i32_0 = arith.constant 0 : i32
    %c0_i32_1 = arith.constant 0 : i32
    return %c0_i32, %c0_i32_0 : i32, i32
  }
  func.func @transform_9(%arg0: i32) -> (i32, i32) {
    %c0_i32 = arith.constant 0 : i32
    %c0_i32_0 = arith.constant 0 : i32
    return %arg0, %c0_i32 : i32, i32
  }
}

</mosaic_0001>

<llo_original>
// kernel: generator_forward.1
$region0: #{generator_forward.1}
  #allocation0 [shape = 'u32[]', space=smem, size = 0x4, offset = 0x4, fixed_abs, tag = 'smem constant byte address 0x4 - core index']
  #allocation1 [shape = 'u32[144,128]{1,0:T(1,128)}', space=vmem, size = 0x12000, scoped, tag = 'internal scratch']
  %s0 = inlined_call_operand.vmem [shape: bf16[256,128], index: 0, kind: input, shape index: {}]
  %s1 = inlined_call_operand.vmem [shape: bf16[128,128], index: 1, kind: input, shape index: {}]
  %s2 = inlined_call_operand.vmem [shape: f32[1,128], index: 2, kind: input, shape index: {}]
  %s3 = inlined_call_operand.vmem [shape: bf16[128,128], index: 3, kind: input, shape index: {}]
  %s4 = inlined_call_operand.vmem [shape: f32[1,128], index: 4, kind: input, shape index: {}]
  %s5 = inlined_call_operand.vmem [shape: bf16[128,128], index: 5, kind: input, shape index: {}]
  %s6 = inlined_call_operand.vmem [shape: f32[1,128], index: 6, kind: input, shape index: {}]
  %s7 = inlined_call_operand.vmem [shape: bf16[128,128], index: 7, kind: input, shape index: {}]
  %s8 = inlined_call_operand.vmem [shape: f32[1,128], index: 8, kind: input, shape index: {}]
  %s9 = inlined_call_operand.vmem [shape: f32[256,128], index: 9, kind: output, shape index: {}]
  %s10 = sld [smem:[#allocation0]]
  $region69: #{generator_forward.1} parent=0
    _
  %s12 = ssub.s32 1, %s10
  %s13 = scalar_select 0, %s12, %s10
  loop: start=0, step=1, limit=4
  $region2: #{generator_forward.1} parent=0 // loop_pre_header
    _
  $region3: #{generator_forward.1} parent=0 // loop_header
    %s15 = sphi 0, %s19
    %p16 = scmp.ge.s32.totalorder %s15, 4
    %s25 = sphi 0, %s27
    %s28 = sphi 0, %s25
    %s29 = sphi 0, %s28
    %s45 = sphi 0, %s29
    %s49 = sphi 0, %s49
    %s51 = sphi 0, %s49
    %s52 = sphi 0, %s51
    %s66 = sphi 0, %s52
    %s70 = sphi 0, %s70
    %s72 = sphi 0, %s70
    %s73 = sphi 0, %s72
    %s87 = sphi 0, %s73
    %s91 = sphi 0, %s91
    %s93 = sphi 0, %s91
    %s94 = sphi 0, %s93
    %s108 = sphi 0, %s94
    %s112 = sphi 0, %s112
    %s114 = sphi 0, %s112
    %s115 = sphi 0, %s114
    %s129 = sphi 0, %s115
    %s133 = sphi 0, %s133
    %s135 = sphi 0, %s133
    %s136 = sphi 0, %s135
    %s150 = sphi 0, %s136
    %s154 = sphi 0, %s154
    %s156 = sphi 0, %s154
    %s157 = sphi 0, %s156
    %s171 = sphi 0, %s157
    %s175 = sphi 0, %s175
    %s177 = sphi 0, %s175
    %s178 = sphi 0, %s177
    %s192 = sphi 0, %s178
    %s196 = sphi 0, %s196
    %s198 = sphi 0, %s196
    %s199 = sphi 0, %s198
    %s213 = sphi 0, %s199
    %s219 = sphi 0, %s221
    %s222 = sphi 0, %s219
    %s223 = sphi 0, %s222
    %s239 = sphi 0, %s223
  $region4: #{generator_forward.1} parent=0 // loop_header_branch
    %18 = sbr.rel (%p16) target = $region8
  $region5: #{generator_forward.1} parent=0 // loop_body
    %s20 = ssub.s32 %s15, 1
    %s21 = ssub.s32 %s15, 2
    %s22 = sadd.s32 %s15, 1
    %s23 = ssub.s32 %s15, %s22
    %p24 = scmp.eq.s32.totalorder %s23, 0
    %s26 = sadd.s32 %s25, 1
    %s27 = scalar_select %p24, %s25, %s26
    %p30 = pneg %p24
    %p31 = scmp.eq.s32.totalorder %s15, 1
    %p32 = por %p30, %p31
    %p33 = scmp.ne.s32.totalorder %s25, %s28
    %p34 = scmp.eq.s32.totalorder %s15, 0
    %p35 = por %p33, %p34
    %p36 = scmp.ne.s32.totalorder %s25, %s28
    %p37 = scmp.eq.s32.totalorder %s20, 1
    %p38 = por %p36, %p37
    %p39 = scmp.ne.s32.totalorder %s28, %s29
    %p40 = scmp.eq.s32.totalorder %s20, 0
    %p41 = por %p39, %p40
    %p42 = scmp.ne.s32.totalorder %s28, %s29
    %p43 = scmp.eq.s32.totalorder %s21, 1
    %p44 = por %p42, %p43
    %p46 = scmp.ne.s32.totalorder %s29, %s45
    %p47 = scmp.eq.s32.totalorder %s21, 0
    %p48 = por %p46, %p47
    %s50 = sadd.s32 %s49, 1
    %p53 = scmp.eq.s32.totalorder %s15, 1
    %p54 = scmp.ne.s32.totalorder %s49, %s51
    %p55 = scmp.eq.s32.totalorder %s15, 0
    %p56 = por %p54, %p55
    %p57 = scmp.ne.s32.totalorder %s49, %s51
    %p58 = scmp.eq.s32.totalorder %s20, 1
    %p59 = por %p57, %p58
    %p60 = scmp.ne.s32.totalorder %s51, %s52
    %p61 = scmp.eq.s32.totalorder %s20, 0
    %p62 = por %p60, %p61
    %p63 = scmp.ne.s32.totalorder %s51, %s52
    %p64 = scmp.eq.s32.totalorder %s21, 1
    %p65 = por %p63, %p64
    %p67 = scmp.ne.s32.totalorder %s52, %s66
    %p68 = scmp.eq.s32.totalorder %s21, 0
    %p69 = por %p67, %p68
    %s71 = sadd.s32 %s70, 1
    %p74 = scmp.eq.s32.totalorder %s15, 1
    %p75 = scmp.ne.s32.totalorder %s70, %s72
    %p76 = scmp.eq.s32.totalorder %s15, 0
    %p77 = por %p75, %p76
    %p78 = scmp.ne.s32.totalorder %s70, %s72
    %p79 = scmp.eq.s32.totalorder %s20, 1
    %p80 = por %p78, %p79
    %p81 = scmp.ne.s32.totalorder %s72, %s73
    %p82 = scmp.eq.s32.totalorder %s20, 0
    %p83 = por %p81, %p82
    %p84 = scmp.ne.s32.totalorder %s72, %s73
    %p85 = scmp.eq.s32.totalorder %s21, 1
    %p86 = por %p84, %p85
    %p88 = scmp.ne.s32.totalorder %s73, %s87
    %p89 = scmp.eq.s32.totalorder %s21, 0
    %p90 = por %p88, %p89
    %s92 = sadd.s32 %s91, 1
    %p95 = scmp.eq.s32.totalorder %s15, 1
    %p96 = scmp.ne.s32.totalorder %s91, %s93
    %p97 = scmp.eq.s32.totalorder %s15, 0
    %p98 = por %p96, %p97
    %p99 = scmp.ne.s32.totalorder %s91, %s93
    %p100 = scmp.eq.s32.totalorder %s20, 1
    %p101 = por %p99, %p100
    %p102 = scmp.ne.s32.totalorder %s93, %s94
    %p103 = scmp.eq.s32.totalorder %s20, 0
    %p104 = por %p102, %p103
    %p105 = scmp.ne.s32.totalorder %s93, %s94
    %p106 = scmp.eq.s32.totalorder %s21, 1
    %p107 = por %p105, %p106
    %p109 = scmp.ne.s32.totalorder %s94, %s108
    %p110 = scmp.eq.s32.totalorder %s21, 0
    %p111 = por %p109, %p110
    %s113 = sadd.s32 %s112, 1
    %p116 = scmp.eq.s32.totalorder %s15, 1
    %p117 = scmp.ne.s32.totalorder %s112, %s114
    %p118 = scmp.eq.s32.totalorder %s15, 0
    %p119 = por %p117, %p118
    %p120 = scmp.ne.s32.totalorder %s112, %s114
    %p121 = scmp.eq.s32.totalorder %s20, 1
    %p122 = por %p120, %p121
    %p123 = scmp.ne.s32.totalorder %s114, %s115
    %p124 = scmp.eq.s32.totalorder %s20, 0
    %p125 = por %p123, %p124
    %p126 = scmp.ne.s32.totalorder %s114, %s115
    %p127 = scmp.eq.s32.totalorder %s21, 1
    %p128 = por %p126, %p127
    %p130 = scmp.ne.s32.totalorder %s115, %s129
    %p131 = scmp.eq.s32.totalorder %s21, 0
    %p132 = por %p130, %p131
    %s134 = sadd.s32 %s133, 1
    %p137 = scmp.eq.s32.totalorder %s15, 1
    %p138 = scmp.ne.s32.totalorder %s133, %s135
    %p139 = scmp.eq.s32.totalorder %s15, 0
    %p140 = por %p138, %p139
    %p141 = scmp.ne.s32.totalorder %s133, %s135
    %p142 = scmp.eq.s32.totalorder %s20, 1
    %p143 = por %p141, %p142
    %p144 = scmp.ne.s32.totalorder %s135, %s136
    %p145 = scmp.eq.s32.totalorder %s20, 0
    %p146 = por %p144, %p145
    %p147 = scmp.ne.s32.totalorder %s135, %s136
    %p148 = scmp.eq.s32.totalorder %s21, 1
    %p149 = por %p147, %p148
    %p151 = scmp.ne.s32.totalorder %s136, %s150
    %p152 = scmp.eq.s32.totalorder %s21, 0
    %p153 = por %p151, %p152
    %s155 = sadd.s32 %s154, 1
    %p158 = scmp.eq.s32.totalorder %s15, 1
    %p159 = scmp.ne.s32.totalorder %s154, %s156
    %p160 = scmp.eq.s32.totalorder %s15, 0
    %p161 = por %p159, %p160
    %p162 = scmp.ne.s32.totalorder %s154, %s156
    %p163 = scmp.eq.s32.totalorder %s20, 1
    %p164 = por %p162, %p163
    %p165 = scmp.ne.s32.totalorder %s156, %s157
    %p166 = scmp.eq.s32.totalorder %s20, 0
    %p167 = por %p165, %p166
    %p168 = scmp.ne.s32.totalorder %s156, %s157
    %p169 = scmp.eq.s32.totalorder %s21, 1
    %p170 = por %p168, %p169
    %p172 = scmp.ne.s32.totalorder %s157, %s171
    %p173 = scmp.eq.s32.totalorder %s21, 0
    %p174 = por %p172, %p173
    %s176 = sadd.s32 %s175, 1
    %p179 = scmp.eq.s32.totalorder %s15, 1
    %p180 = scmp.ne.s32.totalorder %s175, %s177
    %p181 = scmp.eq.s32.totalorder %s15, 0
    %p182 = por %p180, %p181
    %p183 = scmp.ne.s32.totalorder %s175, %s177
    %p184 = scmp.eq.s32.totalorder %s20, 1
    %p185 = por %p183, %p184
    %p186 = scmp.ne.s32.totalorder %s177, %s178
    %p187 = scmp.eq.s32.totalorder %s20, 0
    %p188 = por %p186, %p187
    %p189 = scmp.ne.s32.totalorder %s177, %s178
    %p190 = scmp.eq.s32.totalorder %s21, 1
    %p191 = por %p189, %p190
    %p193 = scmp.ne.s32.totalorder %s178, %s192
    %p194 = scmp.eq.s32.totalorder %s21, 0
    %p195 = por %p193, %p194
    %s197 = sadd.s32 %s196, 1
    %p200 = scmp.eq.s32.totalorder %s15, 1
    %p201 = scmp.ne.s32.totalorder %s196, %s198
    %p202 = scmp.eq.s32.totalorder %s15, 0
    %p203 = por %p201, %p202
    %p204 = scmp.ne.s32.totalorder %s196, %s198
    %p205 = scmp.eq.s32.totalorder %s20, 1
    %p206 = por %p204, %p205
    %p207 = scmp.ne.s32.totalorder %s198, %s199
    %p208 = scmp.eq.s32.totalorder %s20, 0
    %p209 = por %p207, %p208
    %p210 = scmp.ne.s32.totalorder %s198, %s199
    %p211 = scmp.eq.s32.totalorder %s21, 1
    %p212 = por %p210, %p211
    %p214 = scmp.ne.s32.totalorder %s199, %s213
    %p215 = scmp.eq.s32.totalorder %s21, 0
    %p216 = por %p214, %p215
    %s217 = ssub.s32 %s15, %s22
    %p218 = scmp.eq.s32.totalorder %s217, 0
    %s220 = sadd.s32 %s219, 1
    %s221 = scalar_select %p218, %s219, %s220
    %p224 = pneg %p218
    %p225 = scmp.eq.s32.totalorder %s15, 1
    %p226 = por %p224, %p225
    %p227 = scmp.ne.s32.totalorder %s219, %s222
    %p228 = scmp.eq.s32.totalorder %s15, 0
    %p229 = por %p227, %p228
    %p230 = scmp.ne.s32.totalorder %s219, %s222
    %p231 = scmp.eq.s32.totalorder %s20, 1
    %p232 = por %p230, %p231
    %p233 = scmp.ne.s32.totalorder %s222, %s223
    %p234 = scmp.eq.s32.totalorder %s20, 0
    %p235 = por %p233, %p234
    %p236 = scmp.ne.s32.totalorder %s222, %s223
    %p237 = scmp.eq.s32.totalorder %s21, 1
    %p238 = por %p236, %p237
    %p240 = scmp.ne.s32.totalorder %s223, %s239
    %p241 = scmp.eq.s32.totalorder %s21, 0
    %p242 = por %p240, %p241
    %p243 = scmp.le.s32.totalorder 1, %s15
    %p244 = scmp.lt.s32.totalorder %s15, 3
    %p245 = pnand %p243, %p244
    %p246 = pneg %p245
    // Predicated region
    $region9: #{generator_forward.1} parent=5 // pred_check
      _
    $region10: #{generator_forward.1} parent=5 // pred_check_branch
      %248 = sbr.rel (%p245) target = $region12
    $region11: #{generator_forward.1} parent=5 // pred_region
      %s249 = ssub.s32 %s15, 1
      // Predicated region
      $region13: #{generator_forward.1} parent=11 // pred_check
        %p250 = pneg %p62
      $region14: #{generator_forward.1} parent=11 // pred_check_branch
        %252 = sbr.rel (%p250) target = $region16
      $region15: #{generator_forward.1} parent=11 // pred_region
        _
      $region16: #{generator_forward.1} parent=11 // pred_fallthru
        _
      // Predicated region
      $region17: #{generator_forward.1} parent=11 // pred_check
        %p253 = pneg %p83
      $region18: #{generator_forward.1} parent=11 // pred_check_branch
        %255 = sbr.rel (%p253) target = $region20
      $region19: #{generator_forward.1} parent=11 // pred_region
        _
      $region20: #{generator_forward.1} parent=11 // pred_fallthru
        _
      // Predicated region
      $region21: #{generator_forward.1} parent=11 // pred_check
        %p256 = pneg %p104
      $region22: #{generator_forward.1} parent=11 // pred_check_branch
        %258 = sbr.rel (%p256) target = $region24
      $region23: #{generator_forward.1} parent=11 // pred_region
        _
      $region24: #{generator_forward.1} parent=11 // pred_fallthru
        _
      // Predicated region
      $region25: #{generator_forward.1} parent=11 // pred_check
        %p259 = pneg %p125
      $region26: #{generator_forward.1} parent=11 // pred_check_branch
        %261 = sbr.rel (%p259) target = $region28
      $region27: #{generator_forward.1} parent=11 // pred_region
        _
      $region28: #{generator_forward.1} parent=11 // pred_fallthru
        _
      // Predicated region
      $region29: #{generator_forward.1} parent=11 // pred_check
        %p262 = pneg %p146
      $region30: #{generator_forward.1} parent=11 // pred_check_branch
        %264 = sbr.rel (%p262) target = $region32
      $region31: #{generator_forward.1} parent=11 // pred_region
        _
      $region32: #{generator_forward.1} parent=11 // pred_fallthru
        _
      // Predicated region
      $region33: #{generator_forward.1} parent=11 // pred_check
        %p265 = pneg %p167
      $region34: #{generator_forward.1} parent=11 // pred_check_branch
        %267 = sbr.rel (%p265) target = $region36
      $region35: #{generator_forward.1} parent=11 // pred_region
        _
      $region36: #{generator_forward.1} parent=11 // pred_fallthru
        _
      // Predicated region
      $region37: #{generator_forward.1} parent=11 // pred_check
        %p268 = pneg %p188
      $region38: #{generator_forward.1} parent=11 // pred_check_branch
        %270 = sbr.rel (%p268) target = $region40
      $region39: #{generator_forward.1} parent=11 // pred_region
        _
      $region40: #{generator_forward.1} parent=11 // pred_fallthru
        _
      // Predicated region
      $region41: #{generator_forward.1} parent=11 // pred_check
        %p271 = pneg %p209
      $region42: #{generator_forward.1} parent=11 // pred_check_branch
        %273 = sbr.rel (%p271) target = $region44
      $region43: #{generator_forward.1} parent=11 // pred_region
        _
      $region44: #{generator_forward.1} parent=11 // pred_fallthru
        _
    $region12: #{generator_forward.1} parent=5 // pred_fallthru
      _
    %p274 = scmp.lt.s32.totalorder %s15, 2
    // Predicated region
    $region45: #{generator_forward.1} parent=5 // pred_check
      %p275 = pneg %p274
    $region46: #{generator_forward.1} parent=5 // pred_check_branch
      %277 = sbr.rel (%p275) target = $region48
    $region47: #{generator_forward.1} parent=5 // pred_region
      // Predicated region
      $region49: #{generator_forward.1} parent=47 // pred_check
        %p278 = pneg %p35
      $region50: #{generator_forward.1} parent=47 // pred_check_branch
        %280 = sbr.rel (%p278) target = $region52
      $region51: #{generator_forward.1} parent=47 // pred_region
        %s281 = smul.u32 16, %s15
        %p282 = scmp.lt.s32.totalorder %s281, 31
        %s283 = scalar_select %p282, %s281, 31
        %s284 = smul.addr %s283, 4
        %s285 = scalar_lea.vmem %s0, %s284
        %s286 = smul.u32 16, %s15
      $region52: #{generator_forward.1} parent=47 // pred_fallthru
        _
    $region48: #{generator_forward.1} parent=5 // pred_fallthru
      _
    %p287 = scmp.le.s32.totalorder 1, %s15
    %p288 = scmp.lt.s32.totalorder %s15, 3
    %p289 = pnand %p287, %p288
    %p290 = pneg %p289
    // Predicated region
    $region53: #{generator_forward.1} parent=5 // pred_check
      _
    $region54: #{generator_forward.1} parent=5 // pred_check_branch
      %292 = sbr.rel (%p289) target = $region56
    $region55: #{generator_forward.1} parent=5 // pred_region
      %s293 = ssub.s32 %s15, 1
      %s294 = smul.u32 16, %s20
      %p295 = scmp.lt.s32.totalorder %s294, 31
      %s296 = scalar_select %p295, %s294, 31
      %s297 = smul.addr %s296, 4
      %s298 = scalar_lea.vmem %s0, %s297
      %p299 = pneg %p41
      %p300 = pneg %p38
      %p301 = pneg %p62
      %p302 = pneg %p59
      %p303 = pneg %p83
      %p304 = pneg %p80
      %p305 = pneg %p104
      %p306 = pneg %p101
      %p307 = pneg %p125
      %p308 = pneg %p122
      %p309 = pneg %p146
      %p310 = pneg %p143
      %p311 = pneg %p167
      %p312 = pneg %p164
      %p313 = pneg %p188
      %p314 = pneg %p185
      %p315 = pneg %p209
      %p316 = pneg %p206
      %p317 = pneg %p235
      %p318 = pneg %p232
      %s319 = smul.u32 16, %s20
      %p320 = scmp.lt.s32.totalorder %s319, 31
      %s321 = scalar_select %p320, %s319, 31
      %s322 = smul.addr %s321, 8
      %s323 = scalar_lea.vmem %s9, %s322
      %s324 = smul.u32 16, %s20
      %p325 = scmp.lt.s32.totalorder %s324, 31
      %s326 = scalar_select %p325, %s324, 31
      %s327 = smul.addr %s326, 4
      %s328 = scalar_lea.vmem %s0, %s327
      %s329 = smul.u32 16, %s20
      %s330 = smul.u32 16, %s20
      %p331 = scmp.lt.s32.totalorder %s330, 31
      %s332 = scalar_select %p331, %s330, 31
      %s333 = smul.addr %s332, 8
      %s334 = scalar_lea.vmem %s9, %s333
      %s335 = smul.u32 16, %s20
      %v337 = vld [vmem:[%s328] sm:$0xf]
      %v338 = vld [vmem:[%s328 + $0x4] sm:$0xf]
      %v339 = vld [vmem:[%s328 + $0x8] sm:$0xf]
      %v340 = vld [vmem:[%s328 + $0xc] sm:$0xf]
      %v341 = vld [vmem:[%s328 + $0x10] sm:$0xf]
      %v342 = vld [vmem:[%s328 + $0x14] sm:$0xf]
      %v343 = vld [vmem:[%s328 + $0x18] sm:$0xf]
      %v344 = vld [vmem:[%s328 + $0x1c] sm:$0xf]
      %v345 = vld [vmem:[%s328 + $0x20] sm:$0xf]
      %v346 = vld [vmem:[%s328 + $0x24] sm:$0xf]
      %v347 = vld [vmem:[%s328 + $0x28] sm:$0xf]
      %v348 = vld [vmem:[%s328 + $0x2c] sm:$0xf]
      %v349 = vld [vmem:[%s328 + $0x30] sm:$0xf]
      %v350 = vld [vmem:[%s328 + $0x34] sm:$0xf]
      %v351 = vld [vmem:[%s328 + $0x38] sm:$0xf]
      %v352 = vld [vmem:[%s328 + $0x3c] sm:$0xf]
      %v353 = vld [vmem:[%s1] sm:$0xf]
      %v354 = vld [vmem:[%s1 + $0x4] sm:$0xf]
      %v355 = vld [vmem:[%s1 + $0x8] sm:$0xf]
      %v356 = vld [vmem:[%s1 + $0xc] sm:$0xf]
      %v357 = vld [vmem:[%s1 + $0x10] sm:$0xf]
      %v358 = vld [vmem:[%s1 + $0x14] sm:$0xf]
      %v359 = vld [vmem:[%s1 + $0x18] sm:$0xf]
      %v360 = vld [vmem:[%s1 + $0x1c] sm:$0xf]
      %v361 = vld [vmem:[%s1 + $0x20] sm:$0xf]
      %v362 = vld [vmem:[%s1 + $0x24] sm:$0xf]
      %v363 = vld [vmem:[%s1 + $0x28] sm:$0xf]
      %v364 = vld [vmem:[%s1 + $0x2c] sm:$0xf]
      %v365 = vld [vmem:[%s1 + $0x30] sm:$0xf]
      %v366 = vld [vmem:[%s1 + $0x34] sm:$0xf]
      %v367 = vld [vmem:[%s1 + $0x38] sm:$0xf]
      %v368 = vld [vmem:[%s1 + $0x3c] sm:$0xf]
      %v369 = vld [vmem:[%s2] sm:$0x1]
      %v371 = vlaneseq
      %v372 = vshrl.u32 %v371, 7
      %v373 = vsub.s32 0, %v372
      %v374 = vrot.slane %v369, %v373
      %v392 = vunpack.c.l.b16 %v337
      %v393 = vunpack.c.l.b16 %v338
      %v394 = vunpack.c.l.b16 %v339
      %v395 = vunpack.c.l.b16 %v340
      %v396 = vunpack.c.l.b16 %v341
      %v397 = vunpack.c.l.b16 %v342
      %v398 = vunpack.c.l.b16 %v343
      %v399 = vunpack.c.l.b16 %v344
      %v400 = vunpack.c.l.b16 %v345
      %v401 = vunpack.c.l.b16 %v346
      %v402 = vunpack.c.l.b16 %v347
      %v403 = vunpack.c.l.b16 %v348
      %v404 = vunpack.c.l.b16 %v349
      %v405 = vunpack.c.l.b16 %v350
      %v406 = vunpack.c.l.b16 %v351
      %v407 = vunpack.c.l.b16 %v352
      %v408 = vpack.c.b16 %v393, %v392
      %v409 = vpack.c.b16 %v395, %v394
      %v410 = vpack.c.b16 %v397, %v396
      %v411 = vpack.c.b16 %v399, %v398
      %v412 = vpack.c.b16 %v401, %v400
      %v413 = vpack.c.b16 %v403, %v402
      %v414 = vpack.c.b16 %v405, %v404
      %v415 = vpack.c.b16 %v407, %v406
      %v440 = vunpack.c.l.b16 %v353
      %v441 = vunpack.c.l.b16 %v354
      %v442 = vunpack.c.l.b16 %v355
      %v443 = vunpack.c.l.b16 %v356
      %v444 = vunpack.c.l.b16 %v357
      %v445 = vunpack.c.l.b16 %v358
      %v446 = vunpack.c.l.b16 %v359
      %v447 = vunpack.c.l.b16 %v360
      %v448 = vunpack.c.l.b16 %v361
      %v449 = vunpack.c.l.b16 %v362
      %v450 = vunpack.c.l.b16 %v363
      %v451 = vunpack.c.l.b16 %v364
      %v452 = vunpack.c.l.b16 %v365
      %v453 = vunpack.c.l.b16 %v366
      %v454 = vunpack.c.l.b16 %v367
      %v455 = vunpack.c.l.b16 %v368
      %v456 = vpack.c.b16 %v441, %v440
      %v457 = vpack.c.b16 %v443, %v442
      %v458 = vpack.c.b16 %v445, %v444
      %v459 = vpack.c.b16 %v447, %v446
      %v460 = vpack.c.b16 %v449, %v448
      %v461 = vpack.c.b16 %v451, %v450
      %v462 = vpack.c.b16 %v453, %v452
      %v463 = vpack.c.b16 %v455, %v454
      %472 = vmatprep.subr.bf16.mxu0 0
      %473 = vmatpush1.bf16.msra.mxu0 %v463
      %474 = vmatprep.subr.bf16.mxu0 0
      %475 = vmatpush1.bf16.msra.mxu0 %v462
      %476 = vmatprep.subr.bf16.mxu0 0
      %477 = vmatpush1.bf16.msra.mxu0 %v461
      %478 = vmatprep.subr.bf16.mxu0 0
      %479 = vmatpush1.bf16.msra.mxu0 %v460
      %480 = vmatprep.subr.bf16.mxu0 0
      %481 = vmatpush1.bf16.msra.mxu0 %v459
      %482 = vmatprep.subr.bf16.mxu0 0
      %483 = vmatpush1.bf16.msra.mxu0 %v458
      %484 = vmatprep.subr.bf16.mxu0 0
      %485 = vmatpush1.bf16.msra.mxu0 %v457
      %486 = vmatprep.subr.bf16.mxu0 0
      %487 = vmatpush1.bf16.msra.mxu0 %v456
      %488 = vmatprep.subr.bf16.mxu0 0
      %489 = vmatpush2.bf16.msra.mxu0 0
      %490 = vmatprep.subr.bf16.mxu0 0
      %491 = vmatpush2.bf16.msra.mxu0 0
      %492 = vmatprep.subr.bf16.mxu0 0
      %493 = vmatpush2.bf16.msra.mxu0 0
      %494 = vmatprep.subr.bf16.mxu0 0
      %495 = vmatpush2.bf16.msra.mxu0 0
      %496 = vmatprep.subr.bf16.mxu0 0
      %497 = vmatpush2.bf16.msra.mxu0 0
      %498 = vmatprep.subr.bf16.mxu0 0
      %499 = vmatpush2.bf16.msra.mxu0 0
      %500 = vmatprep.subr.bf16.mxu0 0
      %501 = vmatpush2.bf16.msra.mxu0 0
      %502 = vmatprep.subr.bf16.mxu0 0
      %503 = vmatpush2.bf16.msra.mxu0 0
      %504 = vmatprep.mubr.bf16.mxu0 0
      %505 = vmatmul.mubr.bf16.gmra.mxu0 %v408
      %v506 = vpop.f32.mrf.mxu0
      %v507 = vadd.f32 %v374, %v506
      %v508 = vpop.f32.mrf.mxu0
      %v509 = vpop.f32.mrf.mxu0
      %v510 = vadd.f32 %v374, %v509
      %v511 = vpop.f32.mrf.mxu0
      %512 = vmatprep.mubr.bf16.mxu0 0
      %513 = vmatmul.mubr.bf16.gmra.mxu0 %v409
      %v514 = vpop.f32.mrf.mxu0
      %v515 = vadd.f32 %v374, %v514
      %v516 = vpop.f32.mrf.mxu0
      %v517 = vpop.f32.mrf.mxu0
      %v518 = vadd.f32 %v374, %v517
      %v519 = vpop.f32.mrf.mxu0
      %520 = vmatprep.mubr.bf16.mxu0 0
      %521 = vmatmul.mubr.bf16.gmra.mxu0 %v410
      %v522 = vpop.f32.mrf.mxu0
      %v523 = vadd.f32 %v374, %v522
      %v524 = vpop.f32.mrf.mxu0
      %v525 = vpop.f32.mrf.mxu0
      %v526 = vadd.f32 %v374, %v525
      %v527 = vpop.f32.mrf.mxu0
      %528 = vmatprep.mubr.bf16.mxu0 0
      %529 = vmatmul.mubr.bf16.gmra.mxu0 %v411
      %v530 = vpop.f32.mrf.mxu0
      %v531 = vadd.f32 %v374, %v530
      %v532 = vpop.f32.mrf.mxu0
      %v533 = vpop.f32.mrf.mxu0
      %v534 = vadd.f32 %v374, %v533
      %v535 = vpop.f32.mrf.mxu0
      %536 = vmatprep.mubr.bf16.mxu0 0
      %537 = vmatmul.mubr.bf16.gmra.mxu0 %v412
      %v538 = vpop.f32.mrf.mxu0
      %v539 = vadd.f32 %v374, %v538
      %v540 = vpop.f32.mrf.mxu0
      %v541 = vpop.f32.mrf.mxu0
      %v542 = vadd.f32 %v374, %v541
      %v543 = vpop.f32.mrf.mxu0
      %544 = vmatprep.mubr.bf16.mxu0 0
      %545 = vmatmul.mubr.bf16.gmra.mxu0 %v413
      %v546 = vpop.f32.mrf.mxu0
      %v547 = vadd.f32 %v374, %v546
      %v548 = vpop.f32.mrf.mxu0
      %v549 = vpop.f32.mrf.mxu0
      %v550 = vadd.f32 %v374, %v549
      %v551 = vpop.f32.mrf.mxu0
      %552 = vmatprep.mubr.bf16.mxu0 0
      %553 = vmatmul.mubr.bf16.gmra.mxu0 %v414
      %v554 = vpop.f32.mrf.mxu0
      %v555 = vadd.f32 %v374, %v554
      %v556 = vpop.f32.mrf.mxu0
      %v557 = vpop.f32.mrf.mxu0
      %v558 = vadd.f32 %v374, %v557
      %v559 = vpop.f32.mrf.mxu0
      %560 = vmatprep.mubr.bf16.mxu0 0
      %561 = vmatmul.mubr.bf16.gmra.mxu0 %v415
      %v562 = vpop.f32.mrf.mxu0
      %v563 = vadd.f32 %v374, %v562
      %v564 = vpop.f32.mrf.mxu0
      %v565 = vpop.f32.mrf.mxu0
      %v566 = vadd.f32 %v374, %v565
      %v567 = vpop.f32.mrf.mxu0
      %568 = vdwg.mxu0
      %v569 = vmul.f32 %v507, 0.2
      %v570 = vmul.f32 %v510, 0.2
      %v571 = vmul.f32 %v515, 0.2
      %v572 = vmul.f32 %v518, 0.2
      %v573 = vmul.f32 %v523, 0.2
      %v574 = vmul.f32 %v526, 0.2
      %v575 = vmul.f32 %v531, 0.2
      %v576 = vmul.f32 %v534, 0.2
      %v577 = vmul.f32 %v539, 0.2
      %v578 = vmul.f32 %v542, 0.2
      %v579 = vmul.f32 %v547, 0.2
      %v580 = vmul.f32 %v550, 0.2
      %v581 = vmul.f32 %v555, 0.2
      %v582 = vmul.f32 %v558, 0.2
      %v583 = vmul.f32 %v563, 0.2
      %v584 = vmul.f32 %v566, 0.2
      %v585 = vmax.f32 %v507, %v569
      %v586 = vmax.f32 %v510, %v570
      %v587 = vmax.f32 %v515, %v571
      %v588 = vmax.f32 %v518, %v572
      %v589 = vmax.f32 %v523, %v573
      %v590 = vmax.f32 %v526, %v574
      %v591 = vmax.f32 %v531, %v575
      %v592 = vmax.f32 %v534, %v576
      %v593 = vmax.f32 %v539, %v577
      %v594 = vmax.f32 %v542, %v578
      %v595 = vmax.f32 %v547, %v579
      %v596 = vmax.f32 %v550, %v580
      %v597 = vmax.f32 %v555, %v581
      %v598 = vmax.f32 %v558, %v582
      %v599 = vmax.f32 %v563, %v583
      %v600 = vmax.f32 %v566, %v584
      %v601 = vpack.c.bf16 %v586, %v585
      %v602 = vpack.c.bf16 %v588, %v587
      %v603 = vpack.c.bf16 %v590, %v589
      %v604 = vpack.c.bf16 %v592, %v591
      %v605 = vpack.c.bf16 %v594, %v593
      %v606 = vpack.c.bf16 %v596, %v595
      %v607 = vpack.c.bf16 %v598, %v597
      %v608 = vpack.c.bf16 %v600, %v599
      %v609 = vld [vmem:[%s3] sm:$0xf]
      %v610 = vld [vmem:[%s3 + $0x4] sm:$0xf]
      %v611 = vld [vmem:[%s3 + $0x8] sm:$0xf]
      %v612 = vld [vmem:[%s3 + $0xc] sm:$0xf]
      %v613 = vld [vmem:[%s3 + $0x10] sm:$0xf]
      %v614 = vld [vmem:[%s3 + $0x14] sm:$0xf]
      %v615 = vld [vmem:[%s3 + $0x18] sm:$0xf]
      %v616 = vld [vmem:[%s3 + $0x1c] sm:$0xf]
      %v617 = vld [vmem:[%s3 + $0x20] sm:$0xf]
      %v618 = vld [vmem:[%s3 + $0x24] sm:$0xf]
      %v619 = vld [vmem:[%s3 + $0x28] sm:$0xf]
      %v620 = vld [vmem:[%s3 + $0x2c] sm:$0xf]
      %v621 = vld [vmem:[%s3 + $0x30] sm:$0xf]
      %v622 = vld [vmem:[%s3 + $0x34] sm:$0xf]
      %v623 = vld [vmem:[%s3 + $0x38] sm:$0xf]
      %v624 = vld [vmem:[%s3 + $0x3c] sm:$0xf]
      %v625 = vld [vmem:[%s4] sm:$0x1]
      %v627 = vlaneseq
      %v628 = vshrl.u32 %v627, 7
      %v629 = vsub.s32 0, %v628
      %v630 = vrot.slane %v625, %v629
      %v648 = vunpack.c.l.b16 %v609
      %v649 = vunpack.c.l.b16 %v610
      %v650 = vunpack.c.l.b16 %v611
      %v651 = vunpack.c.l.b16 %v612
      %v652 = vunpack.c.l.b16 %v613
      %v653 = vunpack.c.l.b16 %v614
      %v654 = vunpack.c.l.b16 %v615
      %v655 = vunpack.c.l.b16 %v616
      %v656 = vunpack.c.l.b16 %v617
      %v657 = vunpack.c.l.b16 %v618
      %v658 = vunpack.c.l.b16 %v619
      %v659 = vunpack.c.l.b16 %v620
      %v660 = vunpack.c.l.b16 %v621
      %v661 = vunpack.c.l.b16 %v622
      %v662 = vunpack.c.l.b16 %v623
      %v663 = vunpack.c.l.b16 %v624
      %v664 = vpack.c.b16 %v649, %v648
      %v665 = vpack.c.b16 %v651, %v650
      %v666 = vpack.c.b16 %v653, %v652
      %v667 = vpack.c.b16 %v655, %v654
      %v668 = vpack.c.b16 %v657, %v656
      %v669 = vpack.c.b16 %v659, %v658
      %v670 = vpack.c.b16 %v661, %v660
      %v671 = vpack.c.b16 %v663, %v662
      %680 = vmatprep.subr.bf16.mxu0 0
      %681 = vmatpush1.bf16.msra.mxu0 %v671
      %682 = vmatprep.subr.bf16.mxu0 0
      %683 = vmatpush1.bf16.msra.mxu0 %v670
      %684 = vmatprep.subr.bf16.mxu0 0
      %685 = vmatpush1.bf16.msra.mxu0 %v669
      %686 = vmatprep.subr.bf16.mxu0 0
      %687 = vmatpush1.bf16.msra.mxu0 %v668
      %688 = vmatprep.subr.bf16.mxu0 0
      %689 = vmatpush1.bf16.msra.mxu0 %v667
      %690 = vmatprep.subr.bf16.mxu0 0
      %691 = vmatpush1.bf16.msra.mxu0 %v666
      %692 = vmatprep.subr.bf16.mxu0 0
      %693 = vmatpush1.bf16.msra.mxu0 %v665
      %694 = vmatprep.subr.bf16.mxu0 0
      %695 = vmatpush1.bf16.msra.mxu0 %v664
      %696 = vmatprep.subr.bf16.mxu0 0
      %697 = vmatpush2.bf16.msra.mxu0 0
      %698 = vmatprep.subr.bf16.mxu0 0
      %699 = vmatpush2.bf16.msra.mxu0 0
      %700 = vmatprep.subr.bf16.mxu0 0
      %701 = vmatpush2.bf16.msra.mxu0 0
      %702 = vmatprep.subr.bf16.mxu0 0
      %703 = vmatpush2.bf16.msra.mxu0 0
      %704 = vmatprep.subr.bf16.mxu0 0
      %705 = vmatpush2.bf16.msra.mxu0 0
      %706 = vmatprep.subr.bf16.mxu0 0
      %707 = vmatpush2.bf16.msra.mxu0 0
      %708 = vmatprep.subr.bf16.mxu0 0
      %709 = vmatpush2.bf16.msra.mxu0 0
      %710 = vmatprep.subr.bf16.mxu0 0
      %711 = vmatpush2.bf16.msra.mxu0 0
      %712 = vmatprep.mubr.bf16.mxu0 0
      %713 = vmatmul.mubr.bf16.gmra.mxu0 %v601
      %v714 = vpop.f32.mrf.mxu0
      %v715 = vadd.f32 %v630, %v714
      %v716 = vpop.f32.mrf.mxu0
      %v717 = vpop.f32.mrf.mxu0
      %v718 = vadd.f32 %v630, %v717
      %v719 = vpop.f32.mrf.mxu0
      %720 = vmatprep.mubr.bf16.mxu0 0
      %721 = vmatmul.mubr.bf16.gmra.mxu0 %v602
      %v722 = vpop.f32.mrf.mxu0
      %v723 = vadd.f32 %v630, %v722
      %v724 = vpop.f32.mrf.mxu0
      %v725 = vpop.f32.mrf.mxu0
      %v726 = vadd.f32 %v630, %v725
      %v727 = vpop.f32.mrf.mxu0
      %728 = vmatprep.mubr.bf16.mxu0 0
      %729 = vmatmul.mubr.bf16.gmra.mxu0 %v603
      %v730 = vpop.f32.mrf.mxu0
      %v731 = vadd.f32 %v630, %v730
      %v732 = vpop.f32.mrf.mxu0
      %v733 = vpop.f32.mrf.mxu0
      %v734 = vadd.f32 %v630, %v733
      %v735 = vpop.f32.mrf.mxu0
      %736 = vmatprep.mubr.bf16.mxu0 0
      %737 = vmatmul.mubr.bf16.gmra.mxu0 %v604
      %v738 = vpop.f32.mrf.mxu0
      %v739 = vadd.f32 %v630, %v738
      %v740 = vpop.f32.mrf.mxu0
      %v741 = vpop.f32.mrf.mxu0
      %v742 = vadd.f32 %v630, %v741
      %v743 = vpop.f32.mrf.mxu0
      %744 = vmatprep.mubr.bf16.mxu0 0
      %745 = vmatmul.mubr.bf16.gmra.mxu0 %v605
      %v746 = vpop.f32.mrf.mxu0
      %v747 = vadd.f32 %v630, %v746
      %v748 = vpop.f32.mrf.mxu0
      %v749 = vpop.f32.mrf.mxu0
      %v750 = vadd.f32 %v630, %v749
      %v751 = vpop.f32.mrf.mxu0
      %752 = vmatprep.mubr.bf16.mxu0 0
      %753 = vmatmul.mubr.bf16.gmra.mxu0 %v606
      %v754 = vpop.f32.mrf.mxu0
      %v755 = vadd.f32 %v630, %v754
      %v756 = vpop.f32.mrf.mxu0
      %v757 = vpop.f32.mrf.mxu0
      %v758 = vadd.f32 %v630, %v757
      %v759 = vpop.f32.mrf.mxu0
      %760 = vmatprep.mubr.bf16.mxu0 0
      %761 = vmatmul.mubr.bf16.gmra.mxu0 %v607
      %v762 = vpop.f32.mrf.mxu0
      %v763 = vadd.f32 %v630, %v762
      %v764 = vpop.f32.mrf.mxu0
      %v765 = vpop.f32.mrf.mxu0
      %v766 = vadd.f32 %v630, %v765
      %v767 = vpop.f32.mrf.mxu0
      %768 = vmatprep.mubr.bf16.mxu0 0
      %769 = vmatmul.mubr.bf16.gmra.mxu0 %v608
      %v770 = vpop.f32.mrf.mxu0
      %v771 = vadd.f32 %v630, %v770
      %v772 = vpop.f32.mrf.mxu0
      %v773 = vpop.f32.mrf.mxu0
      %v774 = vadd.f32 %v630, %v773
      %v775 = vpop.f32.mrf.mxu0
      %776 = vdwg.mxu0
      %v777 = vmul.f32 %v715, 0.2
      %v778 = vmul.f32 %v718, 0.2
      %v779 = vmul.f32 %v723, 0.2
      %v780 = vmul.f32 %v726, 0.2
      %v781 = vmul.f32 %v731, 0.2
      %v782 = vmul.f32 %v734, 0.2
      %v783 = vmul.f32 %v739, 0.2
      %v784 = vmul.f32 %v742, 0.2
      %v785 = vmul.f32 %v747, 0.2
      %v786 = vmul.f32 %v750, 0.2
      %v787 = vmul.f32 %v755, 0.2
      %v788 = vmul.f32 %v758, 0.2
      %v789 = vmul.f32 %v763, 0.2
      %v790 = vmul.f32 %v766, 0.2
      %v791 = vmul.f32 %v771, 0.2
      %v792 = vmul.f32 %v774, 0.2
      %v793 = vmax.f32 %v715, %v777
      %v794 = vmax.f32 %v718, %v778
      %v795 = vmax.f32 %v723, %v779
      %v796 = vmax.f32 %v726, %v780
      %v797 = vmax.f32 %v731, %v781
      %v798 = vmax.f32 %v734, %v782
      %v799 = vmax.f32 %v739, %v783
      %v800 = vmax.f32 %v742, %v784
      %v801 = vmax.f32 %v747, %v785
      %v802 = vmax.f32 %v750, %v786
      %v803 = vmax.f32 %v755, %v787
      %v804 = vmax.f32 %v758, %v788
      %v805 = vmax.f32 %v763, %v789
      %v806 = vmax.f32 %v766, %v790
      %v807 = vmax.f32 %v771, %v791
      %v808 = vmax.f32 %v774, %v792
      %v809 = vpack.c.bf16 %v794, %v793
      %v810 = vpack.c.bf16 %v796, %v795
      %v811 = vpack.c.bf16 %v798, %v797
      %v812 = vpack.c.bf16 %v800, %v799
      %v813 = vpack.c.bf16 %v802, %v801
      %v814 = vpack.c.bf16 %v804, %v803
      %v815 = vpack.c.bf16 %v806, %v805
      %v816 = vpack.c.bf16 %v808, %v807
      %v817 = vld [vmem:[%s5] sm:$0xf]
      %v818 = vld [vmem:[%s5 + $0x4] sm:$0xf]
      %v819 = vld [vmem:[%s5 + $0x8] sm:$0xf]
      %v820 = vld [vmem:[%s5 + $0xc] sm:$0xf]
      %v821 = vld [vmem:[%s5 + $0x10] sm:$0xf]
      %v822 = vld [vmem:[%s5 + $0x14] sm:$0xf]
      %v823 = vld [vmem:[%s5 + $0x18] sm:$0xf]
      %v824 = vld [vmem:[%s5 + $0x1c] sm:$0xf]
      %v825 = vld [vmem:[%s5 + $0x20] sm:$0xf]
      %v826 = vld [vmem:[%s5 + $0x24] sm:$0xf]
      %v827 = vld [vmem:[%s5 + $0x28] sm:$0xf]
      %v828 = vld [vmem:[%s5 + $0x2c] sm:$0xf]
      %v829 = vld [vmem:[%s5 + $0x30] sm:$0xf]
      %v830 = vld [vmem:[%s5 + $0x34] sm:$0xf]
      %v831 = vld [vmem:[%s5 + $0x38] sm:$0xf]
      %v832 = vld [vmem:[%s5 + $0x3c] sm:$0xf]
      %v833 = vld [vmem:[%s6] sm:$0x1]
      %v835 = vlaneseq
      %v836 = vshrl.u32 %v835, 7
      %v837 = vsub.s32 0, %v836
      %v838 = vrot.slane %v833, %v837
      %v856 = vunpack.c.l.b16 %v817
      %v857 = vunpack.c.l.b16 %v818
      %v858 = vunpack.c.l.b16 %v819
      %v859 = vunpack.c.l.b16 %v820
      %v860 = vunpack.c.l.b16 %v821
      %v861 = vunpack.c.l.b16 %v822
      %v862 = vunpack.c.l.b16 %v823
      %v863 = vunpack.c.l.b16 %v824
      %v864 = vunpack.c.l.b16 %v825
      %v865 = vunpack.c.l.b16 %v826
      %v866 = vunpack.c.l.b16 %v827
      %v867 = vunpack.c.l.b16 %v828
      %v868 = vunpack.c.l.b16 %v829
      %v869 = vunpack.c.l.b16 %v830
      %v870 = vunpack.c.l.b16 %v831
      %v871 = vunpack.c.l.b16 %v832
      %v872 = vpack.c.b16 %v857, %v856
      %v873 = vpack.c.b16 %v859, %v858
      %v874 = vpack.c.b16 %v861, %v860
      %v875 = vpack.c.b16 %v863, %v862
      %v876 = vpack.c.b16 %v865, %v864
      %v877 = vpack.c.b16 %v867, %v866
      %v878 = vpack.c.b16 %v869, %v868
      %v879 = vpack.c.b16 %v871, %v870
      %888 = vmatprep.subr.bf16.mxu0 0
      %889 = vmatpush1.bf16.msra.mxu0 %v879
      %890 = vmatprep.subr.bf16.mxu0 0
      %891 = vmatpush1.bf16.msra.mxu0 %v878
      %892 = vmatprep.subr.bf16.mxu0 0
      %893 = vmatpush1.bf16.msra.mxu0 %v877
      %894 = vmatprep.subr.bf16.mxu0 0
      %895 = vmatpush1.bf16.msra.mxu0 %v876
      %896 = vmatprep.subr.bf16.mxu0 0
      %897 = vmatpush1.bf16.msra.mxu0 %v875
      %898 = vmatprep.subr.bf16.mxu0 0
      %899 = vmatpush1.bf16.msra.mxu0 %v874
      %900 = vmatprep.subr.bf16.mxu0 0
      %901 = vmatpush1.bf16.msra.mxu0 %v873
      %902 = vmatprep.subr.bf16.mxu0 0
      %903 = vmatpush1.bf16.msra.mxu0 %v872
      %904 = vmatprep.subr.bf16.mxu0 0
      %905 = vmatpush2.bf16.msra.mxu0 0
      %906 = vmatprep.subr.bf16.mxu0 0
      %907 = vmatpush2.bf16.msra.mxu0 0
      %908 = vmatprep.subr.bf16.mxu0 0
      %909 = vmatpush2.bf16.msra.mxu0 0
      %910 = vmatprep.subr.bf16.mxu0 0
      %911 = vmatpush2.bf16.msra.mxu0 0
      %912 = vmatprep.subr.bf16.mxu0 0
      %913 = vmatpush2.bf16.msra.mxu0 0
      %914 = vmatprep.subr.bf16.mxu0 0
      %915 = vmatpush2.bf16.msra.mxu0 0
      %916 = vmatprep.subr.bf16.mxu0 0
      %917 = vmatpush2.bf16.msra.mxu0 0
      %918 = vmatprep.subr.bf16.mxu0 0
      %919 = vmatpush2.bf16.msra.mxu0 0
      %920 = vmatprep.mubr.bf16.mxu0 0
      %921 = vmatmul.mubr.bf16.gmra.mxu0 %v809
      %v922 = vpop.f32.mrf.mxu0
      %v923 = vadd.f32 %v838, %v922
      %v924 = vpop.f32.mrf.mxu0
      %v925 = vpop.f32.mrf.mxu0
      %v926 = vadd.f32 %v838, %v925
      %v927 = vpop.f32.mrf.mxu0
      %928 = vmatprep.mubr.bf16.mxu0 0
      %929 = vmatmul.mubr.bf16.gmra.mxu0 %v810
      %v930 = vpop.f32.mrf.mxu0
      %v931 = vadd.f32 %v838, %v930
      %v932 = vpop.f32.mrf.mxu0
      %v933 = vpop.f32.mrf.mxu0
      %v934 = vadd.f32 %v838, %v933
      %v935 = vpop.f32.mrf.mxu0
      %936 = vmatprep.mubr.bf16.mxu0 0
      %937 = vmatmul.mubr.bf16.gmra.mxu0 %v811
      %v938 = vpop.f32.mrf.mxu0
      %v939 = vadd.f32 %v838, %v938
      %v940 = vpop.f32.mrf.mxu0
      %v941 = vpop.f32.mrf.mxu0
      %v942 = vadd.f32 %v838, %v941
      %v943 = vpop.f32.mrf.mxu0
      %944 = vmatprep.mubr.bf16.mxu0 0
      %945 = vmatmul.mubr.bf16.gmra.mxu0 %v812
      %v946 = vpop.f32.mrf.mxu0
      %v947 = vadd.f32 %v838, %v946
      %v948 = vpop.f32.mrf.mxu0
      %v949 = vpop.f32.mrf.mxu0
      %v950 = vadd.f32 %v838, %v949
      %v951 = vpop.f32.mrf.mxu0
      %952 = vmatprep.mubr.bf16.mxu0 0
      %953 = vmatmul.mubr.bf16.gmra.mxu0 %v813
      %v954 = vpop.f32.mrf.mxu0
      %v955 = vadd.f32 %v838, %v954
      %v956 = vpop.f32.mrf.mxu0
      %v957 = vpop.f32.mrf.mxu0
      %v958 = vadd.f32 %v838, %v957
      %v959 = vpop.f32.mrf.mxu0
      %960 = vmatprep.mubr.bf16.mxu0 0
      %961 = vmatmul.mubr.bf16.gmra.mxu0 %v814
      %v962 = vpop.f32.mrf.mxu0
      %v963 = vadd.f32 %v838, %v962
      %v964 = vpop.f32.mrf.mxu0
      %v965 = vpop.f32.mrf.mxu0
      %v966 = vadd.f32 %v838, %v965
      %v967 = vpop.f32.mrf.mxu0
      %968 = vmatprep.mubr.bf16.mxu0 0
      %969 = vmatmul.mubr.bf16.gmra.mxu0 %v815
      %v970 = vpop.f32.mrf.mxu0
      %v971 = vadd.f32 %v838, %v970
      %v972 = vpop.f32.mrf.mxu0
      %v973 = vpop.f32.mrf.mxu0
      %v974 = vadd.f32 %v838, %v973
      %v975 = vpop.f32.mrf.mxu0
      %976 = vmatprep.mubr.bf16.mxu0 0
      %977 = vmatmul.mubr.bf16.gmra.mxu0 %v816
      %v978 = vpop.f32.mrf.mxu0
      %v979 = vadd.f32 %v838, %v978
      %v980 = vpop.f32.mrf.mxu0
      %v981 = vpop.f32.mrf.mxu0
      %v982 = vadd.f32 %v838, %v981
      %v983 = vpop.f32.mrf.mxu0
      %984 = vdwg.mxu0
      %v985 = vmul.f32 %v923, 0.2
      %v986 = vmul.f32 %v926, 0.2
      %v987 = vmul.f32 %v931, 0.2
      %v988 = vmul.f32 %v934, 0.2
      %v989 = vmul.f32 %v939, 0.2
      %v990 = vmul.f32 %v942, 0.2
      %v991 = vmul.f32 %v947, 0.2
      %v992 = vmul.f32 %v950, 0.2
      %v993 = vmul.f32 %v955, 0.2
      %v994 = vmul.f32 %v958, 0.2
      %v995 = vmul.f32 %v963, 0.2
      %v996 = vmul.f32 %v966, 0.2
      %v997 = vmul.f32 %v971, 0.2
      %v998 = vmul.f32 %v974, 0.2
      %v999 = vmul.f32 %v979, 0.2
      %v1000 = vmul.f32 %v982, 0.2
      %v1001 = vmax.f32 %v923, %v985
      %v1002 = vmax.f32 %v926, %v986
      %v1003 = vmax.f32 %v931, %v987
      %v1004 = vmax.f32 %v934, %v988
      %v1005 = vmax.f32 %v939, %v989
      %v1006 = vmax.f32 %v942, %v990
      %v1007 = vmax.f32 %v947, %v991
      %v1008 = vmax.f32 %v950, %v992
      %v1009 = vmax.f32 %v955, %v993
      %v1010 = vmax.f32 %v958, %v994
      %v1011 = vmax.f32 %v963, %v995
      %v1012 = vmax.f32 %v966, %v996
      %v1013 = vmax.f32 %v971, %v997
      %v1014 = vmax.f32 %v974, %v998
      %v1015 = vmax.f32 %v979, %v999
      %v1016 = vmax.f32 %v982, %v1000
      %v1017 = vpack.c.bf16 %v1002, %v1001
      %v1018 = vpack.c.bf16 %v1004, %v1003
      %v1019 = vpack.c.bf16 %v1006, %v1005
      %v1020 = vpack.c.bf16 %v1008, %v1007
      %v1021 = vpack.c.bf16 %v1010, %v1009
      %v1022 = vpack.c.bf16 %v1012, %v1011
      %v1023 = vpack.c.bf16 %v1014, %v1013
      %v1024 = vpack.c.bf16 %v1016, %v1015
      %v1025 = vld [vmem:[%s7] sm:$0xf]
      %v1026 = vld [vmem:[%s7 + $0x4] sm:$0xf]
      %v1027 = vld [vmem:[%s7 + $0x8] sm:$0xf]
      %v1028 = vld [vmem:[%s7 + $0xc] sm:$0xf]
      %v1029 = vld [vmem:[%s7 + $0x10] sm:$0xf]
      %v1030 = vld [vmem:[%s7 + $0x14] sm:$0xf]
      %v1031 = vld [vmem:[%s7 + $0x18] sm:$0xf]
      %v1032 = vld [vmem:[%s7 + $0x1c] sm:$0xf]
      %v1033 = vld [vmem:[%s7 + $0x20] sm:$0xf]
      %v1034 = vld [vmem:[%s7 + $0x24] sm:$0xf]
      %v1035 = vld [vmem:[%s7 + $0x28] sm:$0xf]
      %v1036 = vld [vmem:[%s7 + $0x2c] sm:$0xf]
      %v1037 = vld [vmem:[%s7 + $0x30] sm:$0xf]
      %v1038 = vld [vmem:[%s7 + $0x34] sm:$0xf]
      %v1039 = vld [vmem:[%s7 + $0x38] sm:$0xf]
      %v1040 = vld [vmem:[%s7 + $0x3c] sm:$0xf]
      %v1041 = vld [vmem:[%s8] sm:$0x1]
      %v1043 = vlaneseq
      %v1044 = vshrl.u32 %v1043, 7
      %v1045 = vsub.s32 0, %v1044
      %v1046 = vrot.slane %v1041, %v1045
      %v1064 = vunpack.c.l.b16 %v1025
      %v1065 = vunpack.c.l.b16 %v1026
      %v1066 = vunpack.c.l.b16 %v1027
      %v1067 = vunpack.c.l.b16 %v1028
      %v1068 = vunpack.c.l.b16 %v1029
      %v1069 = vunpack.c.l.b16 %v1030
      %v1070 = vunpack.c.l.b16 %v1031
      %v1071 = vunpack.c.l.b16 %v1032
      %v1072 = vunpack.c.l.b16 %v1033
      %v1073 = vunpack.c.l.b16 %v1034
      %v1074 = vunpack.c.l.b16 %v1035
      %v1075 = vunpack.c.l.b16 %v1036
      %v1076 = vunpack.c.l.b16 %v1037
      %v1077 = vunpack.c.l.b16 %v1038
      %v1078 = vunpack.c.l.b16 %v1039
      %v1079 = vunpack.c.l.b16 %v1040
      %v1080 = vpack.c.b16 %v1065, %v1064
      %v1081 = vpack.c.b16 %v1067, %v1066
      %v1082 = vpack.c.b16 %v1069, %v1068
      %v1083 = vpack.c.b16 %v1071, %v1070
      %v1084 = vpack.c.b16 %v1073, %v1072
      %v1085 = vpack.c.b16 %v1075, %v1074
      %v1086 = vpack.c.b16 %v1077, %v1076
      %v1087 = vpack.c.b16 %v1079, %v1078
      %1096 = vmatprep.subr.bf16.mxu0 0
      %1097 = vmatpush1.bf16.msra.mxu0 %v1087
      %1098 = vmatprep.subr.bf16.mxu0 0
      %1099 = vmatpush1.bf16.msra.mxu0 %v1086
      %1100 = vmatprep.subr.bf16.mxu0 0
      %1101 = vmatpush1.bf16.msra.mxu0 %v1085
      %1102 = vmatprep.subr.bf16.mxu0 0
      %1103 = vmatpush1.bf16.msra.mxu0 %v1084
      %1104 = vmatprep.subr.bf16.mxu0 0
      %1105 = vmatpush1.bf16.msra.mxu0 %v1083
      %1106 = vmatprep.subr.bf16.mxu0 0
      %1107 = vmatpush1.bf16.msra.mxu0 %v1082
      %1108 = vmatprep.subr.bf16.mxu0 0
      %1109 = vmatpush1.bf16.msra.mxu0 %v1081
      %1110 = vmatprep.subr.bf16.mxu0 0
      %1111 = vmatpush1.bf16.msra.mxu0 %v1080
      %1112 = vmatprep.subr.bf16.mxu0 0
      %1113 = vmatpush2.bf16.msra.mxu0 0
      %1114 = vmatprep.subr.bf16.mxu0 0
      %1115 = vmatpush2.bf16.msra.mxu0 0
      %1116 = vmatprep.subr.bf16.mxu0 0
      %1117 = vmatpush2.bf16.msra.mxu0 0
      %1118 = vmatprep.subr.bf16.mxu0 0
      %1119 = vmatpush2.bf16.msra.mxu0 0
      %1120 = vmatprep.subr.bf16.mxu0 0
      %1121 = vmatpush2.bf16.msra.mxu0 0
      %1122 = vmatprep.subr.bf16.mxu0 0
      %1123 = vmatpush2.bf16.msra.mxu0 0
      %1124 = vmatprep.subr.bf16.mxu0 0
      %1125 = vmatpush2.bf16.msra.mxu0 0
      %1126 = vmatprep.subr.bf16.mxu0 0
      %1127 = vmatpush2.bf16.msra.mxu0 0
      %1128 = vmatprep.mubr.bf16.mxu0 0
      %1129 = vmatmul.mubr.bf16.gmra.mxu0 %v1017
      %v1130 = vpop.f32.mrf.mxu0
      %v1131 = vadd.f32 %v1046, %v1130
      %v1132 = vpop.f32.mrf.mxu0
      %v1133 = vpop.f32.mrf.mxu0
      %v1134 = vadd.f32 %v1046, %v1133
      %v1135 = vpop.f32.mrf.mxu0
      %1136 = vmatprep.mubr.bf16.mxu0 0
      %1137 = vmatmul.mubr.bf16.gmra.mxu0 %v1018
      %v1138 = vpop.f32.mrf.mxu0
      %v1139 = vadd.f32 %v1046, %v1138
      %v1140 = vpop.f32.mrf.mxu0
      %v1141 = vpop.f32.mrf.mxu0
      %v1142 = vadd.f32 %v1046, %v1141
      %v1143 = vpop.f32.mrf.mxu0
      %1144 = vmatprep.mubr.bf16.mxu0 0
      %1145 = vmatmul.mubr.bf16.gmra.mxu0 %v1019
      %v1146 = vpop.f32.mrf.mxu0
      %v1147 = vadd.f32 %v1046, %v1146
      %v1148 = vpop.f32.mrf.mxu0
      %v1149 = vpop.f32.mrf.mxu0
      %v1150 = vadd.f32 %v1046, %v1149
      %v1151 = vpop.f32.mrf.mxu0
      %1152 = vmatprep.mubr.bf16.mxu0 0
      %1153 = vmatmul.mubr.bf16.gmra.mxu0 %v1020
      %v1154 = vpop.f32.mrf.mxu0
      %v1155 = vadd.f32 %v1046, %v1154
      %v1156 = vpop.f32.mrf.mxu0
      %v1157 = vpop.f32.mrf.mxu0
      %v1158 = vadd.f32 %v1046, %v1157
      %v1159 = vpop.f32.mrf.mxu0
      %1160 = vmatprep.mubr.bf16.mxu0 0
      %1161 = vmatmul.mubr.bf16.gmra.mxu0 %v1021
      %v1162 = vpop.f32.mrf.mxu0
      %v1163 = vadd.f32 %v1046, %v1162
      %v1164 = vpop.f32.mrf.mxu0
      %v1165 = vpop.f32.mrf.mxu0
      %v1166 = vadd.f32 %v1046, %v1165
      %v1167 = vpop.f32.mrf.mxu0
      %1168 = vmatprep.mubr.bf16.mxu0 0
      %1169 = vmatmul.mubr.bf16.gmra.mxu0 %v1022
      %v1170 = vpop.f32.mrf.mxu0
      %v1171 = vadd.f32 %v1046, %v1170
      %v1172 = vpop.f32.mrf.mxu0
      %v1173 = vpop.f32.mrf.mxu0
      %v1174 = vadd.f32 %v1046, %v1173
      %v1175 = vpop.f32.mrf.mxu0
      %1176 = vmatprep.mubr.bf16.mxu0 0
      %1177 = vmatmul.mubr.bf16.gmra.mxu0 %v1023
      %v1178 = vpop.f32.mrf.mxu0
      %v1179 = vadd.f32 %v1046, %v1178
      %v1180 = vpop.f32.mrf.mxu0
      %v1181 = vpop.f32.mrf.mxu0
      %v1182 = vadd.f32 %v1046, %v1181
      %v1183 = vpop.f32.mrf.mxu0
      %1184 = vmatprep.mubr.bf16.mxu0 0
      %1185 = vmatmul.mubr.bf16.gmra.mxu0 %v1024
      %v1186 = vpop.f32.mrf.mxu0
      %v1187 = vadd.f32 %v1046, %v1186
      %v1188 = vpop.f32.mrf.mxu0
      %v1189 = vpop.f32.mrf.mxu0
      %v1190 = vadd.f32 %v1046, %v1189
      %v1191 = vpop.f32.mrf.mxu0
      %1192 = vdwg.mxu0
      %v1193 = vtanh.pop %v1131
      %v1194 = vtanh.pop %v1134
      %v1195 = vtanh.pop %v1139
      %v1196 = vtanh.pop %v1142
      %v1197 = vtanh.pop %v1147
      %v1198 = vtanh.pop %v1150
      %v1199 = vtanh.pop %v1155
      %v1200 = vtanh.pop %v1158
      %v1201 = vtanh.pop %v1163
      %v1202 = vtanh.pop %v1166
      %v1203 = vtanh.pop %v1171
      %v1204 = vtanh.pop %v1174
      %v1205 = vtanh.pop %v1179
      %v1206 = vtanh.pop %v1182
      %v1207 = vtanh.pop %v1187
      %v1208 = vtanh.pop %v1190
      %1209 = vst [vmem:[%s334] sm:$0xff] %v1193
      %1210 = vst [vmem:[%s334 + $0x8] sm:$0xff] %v1194
      %1211 = vst [vmem:[%s334 + $0x10] sm:$0xff] %v1195
      %1212 = vst [vmem:[%s334 + $0x18] sm:$0xff] %v1196
      %1213 = vst [vmem:[%s334 + $0x20] sm:$0xff] %v1197
      %1214 = vst [vmem:[%s334 + $0x28] sm:$0xff] %v1198
      %1215 = vst [vmem:[%s334 + $0x30] sm:$0xff] %v1199
      %1216 = vst [vmem:[%s334 + $0x38] sm:$0xff] %v1200
      %1217 = vst [vmem:[%s334 + $0x40] sm:$0xff] %v1201
      %1218 = vst [vmem:[%s334 + $0x48] sm:$0xff] %v1202
      %1219 = vst [vmem:[%s334 + $0x50] sm:$0xff] %v1203
      %1220 = vst [vmem:[%s334 + $0x58] sm:$0xff] %v1204
      %1221 = vst [vmem:[%s334 + $0x60] sm:$0xff] %v1205
      %1222 = vst [vmem:[%s334 + $0x68] sm:$0xff] %v1206
      %1223 = vst [vmem:[%s334 + $0x70] sm:$0xff] %v1207
      %1224 = vst [vmem:[%s334 + $0x78] sm:$0xff] %v1208
      %s1225 = smul.u32 16, %s20
      %p1226 = scmp.lt.s32.totalorder %s1225, 31
      %s1227 = scalar_select %p1226, %s1225, 31
      %s1228 = smul.addr %s1227, 8
      %s1229 = scalar_lea.vmem %s9, %s1228
      // Predicated region
      $region57: #{generator_forward.1} parent=55 // pred_check
        %p1230 = pneg %p232
      $region58: #{generator_forward.1} parent=55 // pred_check_branch
        %1232 = sbr.rel (%p1230) target = $region60
      $region59: #{generator_forward.1} parent=55 // pred_region
        %s1233 = smul.u32 16, %s20
      $region60: #{generator_forward.1} parent=55 // pred_fallthru
        _
    $region56: #{generator_forward.1} parent=5 // pred_fallthru
      _
    %p1234 = scmp.le.s32.totalorder 2, %s15
    // Predicated region
    $region61: #{generator_forward.1} parent=5 // pred_check
      %p1235 = pneg %p1234
    $region62: #{generator_forward.1} parent=5 // pred_check_branch
      %1237 = sbr.rel (%p1235) target = $region64
    $region63: #{generator_forward.1} parent=5 // pred_region
      %s1238 = ssub.s32 %s15, 2
      // Predicated region
      $region65: #{generator_forward.1} parent=63 // pred_check
        %p1239 = pneg %p238
      $region66: #{generator_forward.1} parent=63 // pred_check_branch
        %1241 = sbr.rel (%p1239) target = $region68
      $region67: #{generator_forward.1} parent=63 // pred_region
        %s1242 = smul.u32 16, %s21
        %p1243 = scmp.lt.s32.totalorder %s1242, 31
        %s1244 = scalar_select %p1243, %s1242, 31
        %s1245 = smul.addr %s1244, 8
        %s1246 = scalar_lea.vmem %s9, %s1245
      $region68: #{generator_forward.1} parent=63 // pred_fallthru
        _
    $region64: #{generator_forward.1} parent=5 // pred_fallthru
      _
  $region6: #{generator_forward.1} parent=0 // loop_footer
    %s19 = sadd.s32 1, %s15
  $region7: #{generator_forward.1} parent=0 // loop_footer_branch
    %14 = sbr.rel target = $region3
  $region8: #{generator_forward.1} parent=0 // loop_exit
    _

</llo_original>
